<compile_context>
chip_gen: v5e
topology: v5e:2x2
jax: 0.10.0
libtpu: 0.0.40
codegen_flags: <defaults>
</compile_context>

<pallas_src>
import functools

import jax
import jax.numpy as jnp
from jax.experimental import pallas as pl
from jax.experimental.pallas import tpu as pltpu

WIDTH = 256
IN_DIM = 4
K_PAD = 16           # fc1 contraction zero-padded to one bf16 sublane tile
OUT_DIM = 1
FC5_ROWS = 8         # w5 replicated across 8 sublanes -> well-shaped MXU matmul
DEFAULT_BLOCK_B = 1024


def _round_up(x, m):
    return ((x + m - 1) // m) * m


def _epilogue_dtype():
    """bf16 bias+ReLU on v6e/v7x (packed VALU); f32 on v5e (no bf16 VALUs there)."""
    try:
        kind = jax.devices()[0].device_kind.lower()
    except Exception:
        kind = ""
    return jnp.float32 if "v5" in kind else jnp.bfloat16


def _mlp_kernel(x_ref,
                w1_ref, b1_ref,
                w2_ref, b2_ref,
                w3_ref, b3_ref,
                w4_ref, b4_ref,
                w5_ref, b5_ref,
                o_ref, *, ep_dtype):
    """Fused 5-layer MLP for one batch tile of `tb` rows.

    All matmuls run on the MXU in bf16 with f32 accumulation. The per-layer
    bias+ReLU epilogue runs in `ep_dtype` (bf16 on v6e/v7x, f32 on v5e). Dropout
    is an inference no-op. fc5 (WIDTH -> 1) is computed in transposed orientation
    so the per-tile output is a lane-dense (1, tb) row.
    """

    def dense_relu(h_bf16, w_ref, b_ref):
        acc = jnp.dot(h_bf16, w_ref[...], preferred_element_type=jnp.float32)
        h = jnp.maximum(acc.astype(ep_dtype) + b_ref[...], 0)
        return h.astype(jnp.bfloat16)   # bf16 input for the next MXU matmul

    # fc1: (tb, K_PAD) x (K_PAD, WIDTH); K zero-padded to 16 in the wrapper.
    h = dense_relu(x_ref[...], w1_ref, b1_ref)
    # fc2..fc4: (tb, WIDTH) x (WIDTH, WIDTH)
    for w_ref, b_ref in ((w2_ref, b2_ref), (w3_ref, b3_ref), (w4_ref, b4_ref)):
        h = dense_relu(h, w_ref, b_ref)

    # fc5 as (FC5_ROWS, WIDTH) x (tb, WIDTH)^T -> (FC5_ROWS, tb); all rows of the
    # lhs are identical copies of w5, so row 0 is the fc5 result for every batch row.
    scores = jax.lax.dot_general(
        w5_ref[...], h,
        dimension_numbers=(((1,), (1,)), ((), ())),
        preferred_element_type=jnp.float32)                 # (FC5_ROWS, tb)
    row = scores[0:1, :] + b5_ref[0, 0]                     # fc5 bias (SMEM scalar)
    o_ref[...] = row.astype(o_ref.dtype)


@functools.partial(jax.jit, static_argnames=("block_b",))
def pendulum_net_forward(x, params, block_b=DEFAULT_BLOCK_B):
    """x: [B, 4] float32, params: dict of weights/biases. Returns [B, 1] float32."""
    B = x.shape[0]
    ep_dtype = _epilogue_dtype()

    # ---- batch tiling -------------------------------------------------------
    # Small batches: one grid step (per-step overhead dominates anyway).
    # B >= 256: at least two grid steps so the "parallel" axis shards across v7x's
    # two TensorCores; tb is a multiple of 128 so the (1, tb) output block stays
    # lane-aligned. Capped at block_b to bound per-step VMEM (~3 MiB at tb=1024).
    if B < 256:
        tb = _round_up(max(B, 8), 8)
    else:
        tb = min(block_b, _round_up(-(-B // 2), 128))
    n_tiles = -(-B // tb)
    b_pad = n_tiles * tb

    # ---- operand preparation (bf16 MXU weights, zero-padded fc1 contraction) --
    x_in = jnp.pad(x.astype(jnp.bfloat16),
                   ((0, b_pad - B), (0, K_PAD - IN_DIM)))
    w1 = jnp.pad(params["w1"].astype(jnp.bfloat16), ((0, K_PAD - IN_DIM), (0, 0)))
    b1 = params["b1"].astype(ep_dtype)
    w2 = params["w2"].astype(jnp.bfloat16)
    b2 = params["b2"].astype(ep_dtype)
    w3 = params["w3"].astype(jnp.bfloat16)
    b3 = params["b3"].astype(ep_dtype)
    w4 = params["w4"].astype(jnp.bfloat16)
    b4 = params["b4"].astype(ep_dtype)
    w5 = jnp.broadcast_to(params["w5"].reshape(1, WIDTH).astype(jnp.bfloat16),
                          (FC5_ROWS, WIDTH))
    b5 = params["b5"].reshape(1, 1).astype(jnp.float32)     # SMEM scalar

    # Constant index maps: weight/bias blocks stay VMEM-resident across grid steps
    # (Pallas skips the re-fetch when the block index repeats).
    # TODO(synk): single-buffer these constant blocks (pl.Buffered(1)) and pin the
    # ~0.4 MB of weights across calls (cross-pallas_call futures) for the
    # tiny-batch repeated-call regime.
    def const_spec(shape):
        return pl.BlockSpec(shape, lambda i: (0, 0))

    in_specs = [
        pl.BlockSpec((tb, K_PAD), lambda i: (i, 0)),            # x tile
        const_spec((K_PAD, WIDTH)), const_spec((1, WIDTH)),     # fc1
        const_spec((WIDTH, WIDTH)), const_spec((1, WIDTH)),     # fc2
        const_spec((WIDTH, WIDTH)), const_spec((1, WIDTH)),     # fc3
        const_spec((WIDTH, WIDTH)), const_spec((1, WIDTH)),     # fc4
        const_spec((FC5_ROWS, WIDTH)),                          # fc5 weight rows
        pl.BlockSpec(memory_space=pltpu.MemorySpace.SMEM),      # fc5 bias scalar
    ]
    # Lane-dense output: one (1, tb) row per grid step of a (1, b_pad) result.
    out_specs = pl.BlockSpec((1, tb), lambda i: (0, i))

    out = pl.pallas_call(
        functools.partial(_mlp_kernel, ep_dtype=ep_dtype),
        out_shape=jax.ShapeDtypeStruct((1, b_pad), jnp.float32),
        grid_spec=pltpu.PrefetchScalarGridSpec(
            num_scalar_prefetch=0,
            grid=(n_tiles,),
            in_specs=in_specs,
            out_specs=out_specs,
        ),
        compiler_params=pltpu.CompilerParams(
            dimension_semantics=("parallel",),
        ),
    )(x_in, w1, b1, w2, b2, w3, b3, w4, b4, w5, b5)

    return out[0, :B].reshape(B, OUT_DIM)


def init_params(key):
    """Deterministic init mimicking nn.Linear's U(-1/sqrt(fan_in), 1/sqrt(fan_in))."""
    dims = [(IN_DIM, WIDTH), (WIDTH, WIDTH), (WIDTH, WIDTH), (WIDTH, WIDTH),
            (WIDTH, OUT_DIM)]
    params = {}
    keys = jax.random.split(key, 2 * len(dims))
    for idx, (fan_in, fan_out) in enumerate(dims):
        bound = 1.0 / jnp.sqrt(float(fan_in))
        w = jax.random.uniform(keys[2 * idx], (fan_in, fan_out),
                               minval=-bound, maxval=bound, dtype=jnp.float32)
        b = jax.random.uniform(keys[2 * idx + 1], (1, fan_out),
                               minval=-bound, maxval=bound, dtype=jnp.float32)
        params[f"w{idx + 1}"] = w
        params[f"b{idx + 1}"] = b
    return params


def reference_forward(x, params):
    h = x
    for i in range(1, 5):
        h = jnp.maximum(h @ params[f"w{i}"] + params[f"b{i}"], 0.0)
    return h @ params["w5"] + params["b5"]


if __name__ == "__main__":
    key = jax.random.PRNGKey(0)
    pkey, k1, k2, k3 = jax.random.split(key, 4)

    params = init_params(pkey)

    # bf16 MXU matmuls (now including fc1/fc5 and, on v6e/v7x, the bf16 bias/ReLU
    # epilogue) -> loosened tolerance vs the f32 reference; intentional tradeoff.
    tol = dict(atol=5e-2, rtol=5e-2)

    # 1) Small, sublane-aligned batch (single grid step).
    x = jax.random.normal(k1, (32, IN_DIM), dtype=jnp.float32)
    out = jax.block_until_ready(pendulum_net_forward(x, params))
    assert out.shape == (32, OUT_DIM)
    assert jnp.allclose(out, reference_forward(x, params), **tol), "mismatch (B=32)"

    # 2) Ragged tiny batch (exercises batch zero-padding).
    x2 = jax.random.normal(k2, (10, IN_DIM), dtype=jnp.float32)
    out2 = jax.block_until_ready(pendulum_net_forward(x2, params))
    assert out2.shape == (10, OUT_DIM)
    assert jnp.allclose(out2, reference_forward(x2, params), **tol), "mismatch (B=10)"

    # 3) Ragged multi-tile batch (>= 2 grid steps, lane-dense multi-block output).
    x3 = jax.random.normal(k3, (300, IN_DIM), dtype=jnp.float32)
    out3 = jax.block_until_ready(pendulum_net_forward(x3, params))
    assert out3.shape == (300, OUT_DIM)
    assert jnp.allclose(out3, reference_forward(x3, params), **tol), "mismatch (B=300)"

    print("KERNEL_OK")
</pallas_src>

<mosaic_0001>
module attributes {stable_mosaic.version = 11 : i64} {
  func.func @_mlp_kernel(%arg0: i32, %arg1: memref<32x16xbf16, #tpu.memory_space<vmem>>, %arg2: memref<16x256xbf16, #tpu.memory_space<vmem>>, %arg3: memref<1x256xbf16, #tpu.memory_space<vmem>>, %arg4: memref<256x256xbf16, #tpu.memory_space<vmem>>, %arg5: memref<1x256xbf16, #tpu.memory_space<vmem>>, %arg6: memref<256x256xbf16, #tpu.memory_space<vmem>>, %arg7: memref<1x256xbf16, #tpu.memory_space<vmem>>, %arg8: memref<256x256xbf16, #tpu.memory_space<vmem>>, %arg9: memref<1x256xbf16, #tpu.memory_space<vmem>>, %arg10: memref<8x256xbf16, #tpu.memory_space<vmem>>, %arg11: memref<1x1xf32, #tpu.memory_space<smem>>, %arg12: memref<1x32xf32, #tpu.memory_space<vmem>>) attributes {dimension_semantics = [#tpu.dimension_semantics<parallel>], iteration_bounds = array<i64: 1>, scalar_prefetch = 0 : i64, scratch_operands = 0 : i64, tpu.core_type = #tpu.core_type<tc>, window_params = [{transform_indices = @transform_0, window_bounds = array<i64: 32, 16>}, {pipeline_mode = #tpu.pipeline_mode<synchronous>, transform_indices = @transform_1, window_bounds = array<i64: 16, 256>}, {pipeline_mode = #tpu.pipeline_mode<synchronous>, transform_indices = @transform_2, window_bounds = array<i64: 1, 256>}, {pipeline_mode = #tpu.pipeline_mode<synchronous>, transform_indices = @transform_3, window_bounds = array<i64: 256, 256>}, {pipeline_mode = #tpu.pipeline_mode<synchronous>, transform_indices = @transform_4, window_bounds = array<i64: 1, 256>}, {pipeline_mode = #tpu.pipeline_mode<synchronous>, transform_indices = @transform_5, window_bounds = array<i64: 256, 256>}, {pipeline_mode = #tpu.pipeline_mode<synchronous>, transform_indices = @transform_6, window_bounds = array<i64: 1, 256>}, {pipeline_mode = #tpu.pipeline_mode<synchronous>, transform_indices = @transform_7, window_bounds = array<i64: 256, 256>}, {pipeline_mode = #tpu.pipeline_mode<synchronous>, transform_indices = @transform_8, window_bounds = array<i64: 1, 256>}, {pipeline_mode = #tpu.pipeline_mode<synchronous>, transform_indices = @transform_9, window_bounds = array<i64: 8, 256>}, {transform_indices = @transform_10, window_bounds = array<i64: 1, 1>}, {transform_indices = @transform_11, window_bounds = array<i64: 1, 32>}]} {
    %c0 = arith.constant 0 : index
    %c0_0 = arith.constant 0 : index
    %0 = vector.load %arg1[%c0, %c0_0] : memref<32x16xbf16, #tpu.memory_space<vmem>>, vector<32x16xbf16>
    %c0_1 = arith.constant 0 : index
    %c0_2 = arith.constant 0 : index
    %1 = vector.load %arg2[%c0_1, %c0_2] : memref<16x256xbf16, #tpu.memory_space<vmem>>, vector<16x256xbf16>
    %cst = arith.constant dense<0.000000e+00> : vector<32x256xf32>
    %2 = tpu.matmul %0, %1, %cst {dimension_numbers = #tpu.dot_dimension_numbers<[1], [0], [0], [1], [0, 0, 1, 1], [], []>} : vector<32x16xbf16>, vector<16x256xbf16>, vector<32x256xf32> -> vector<32x256xf32>
    %3 = arith.truncf %2 : vector<32x256xf32> to vector<32x256xbf16>
    %c0_3 = arith.constant 0 : index
    %c0_4 = arith.constant 0 : index
    %4 = vector.load %arg3[%c0_3, %c0_4] : memref<1x256xbf16, #tpu.memory_space<vmem>>, vector<1x256xbf16>
    %5 = vector.broadcast %4 : vector<1x256xbf16> to vector<32x256xbf16>
    %6 = arith.addf %3, %5 : vector<32x256xbf16>
    %cst_5 = arith.constant 0.000000e+00 : bf16
    %7 = vector.broadcast %cst_5 : bf16 to vector<32x256xbf16>
    %8 = arith.maximumf %6, %7 : vector<32x256xbf16>
    %c0_6 = arith.constant 0 : index
    %c0_7 = arith.constant 0 : index
    %9 = vector.load %arg4[%c0_6, %c0_7] : memref<256x256xbf16, #tpu.memory_space<vmem>>, vector<256x256xbf16>
    %cst_8 = arith.constant dense<0.000000e+00> : vector<32x256xf32>
    %10 = tpu.matmul %8, %9, %cst_8 {dimension_numbers = #tpu.dot_dimension_numbers<[1], [0], [0], [1], [0, 0, 1, 1], [], []>} : vector<32x256xbf16>, vector<256x256xbf16>, vector<32x256xf32> -> vector<32x256xf32>
    %11 = arith.truncf %10 : vector<32x256xf32> to vector<32x256xbf16>
    %c0_9 = arith.constant 0 : index
    %c0_10 = arith.constant 0 : index
    %12 = vector.load %arg5[%c0_9, %c0_10] : memref<1x256xbf16, #tpu.memory_space<vmem>>, vector<1x256xbf16>
    %13 = vector.broadcast %12 : vector<1x256xbf16> to vector<32x256xbf16>
    %14 = arith.addf %11, %13 : vector<32x256xbf16>
    %cst_11 = arith.constant 0.000000e+00 : bf16
    %15 = vector.broadcast %cst_11 : bf16 to vector<32x256xbf16>
    %16 = arith.maximumf %14, %15 : vector<32x256xbf16>
    %c0_12 = arith.constant 0 : index
    %c0_13 = arith.constant 0 : index
    %17 = vector.load %arg6[%c0_12, %c0_13] : memref<256x256xbf16, #tpu.memory_space<vmem>>, vector<256x256xbf16>
    %cst_14 = arith.constant dense<0.000000e+00> : vector<32x256xf32>
    %18 = tpu.matmul %16, %17, %cst_14 {dimension_numbers = #tpu.dot_dimension_numbers<[1], [0], [0], [1], [0, 0, 1, 1], [], []>} : vector<32x256xbf16>, vector<256x256xbf16>, vector<32x256xf32> -> vector<32x256xf32>
    %19 = arith.truncf %18 : vector<32x256xf32> to vector<32x256xbf16>
    %c0_15 = arith.constant 0 : index
    %c0_16 = arith.constant 0 : index
    %20 = vector.load %arg7[%c0_15, %c0_16] : memref<1x256xbf16, #tpu.memory_space<vmem>>, vector<1x256xbf16>
    %21 = vector.broadcast %20 : vector<1x256xbf16> to vector<32x256xbf16>
    %22 = arith.addf %19, %21 : vector<32x256xbf16>
    %cst_17 = arith.constant 0.000000e+00 : bf16
    %23 = vector.broadcast %cst_17 : bf16 to vector<32x256xbf16>
    %24 = arith.maximumf %22, %23 : vector<32x256xbf16>
    %c0_18 = arith.constant 0 : index
    %c0_19 = arith.constant 0 : index
    %25 = vector.load %arg8[%c0_18, %c0_19] : memref<256x256xbf16, #tpu.memory_space<vmem>>, vector<256x256xbf16>
    %cst_20 = arith.constant dense<0.000000e+00> : vector<32x256xf32>
    %26 = tpu.matmul %24, %25, %cst_20 {dimension_numbers = #tpu.dot_dimension_numbers<[1], [0], [0], [1], [0, 0, 1, 1], [], []>} : vector<32x256xbf16>, vector<256x256xbf16>, vector<32x256xf32> -> vector<32x256xf32>
    %27 = arith.truncf %26 : vector<32x256xf32> to vector<32x256xbf16>
    %c0_21 = arith.constant 0 : index
    %c0_22 = arith.constant 0 : index
    %28 = vector.load %arg9[%c0_21, %c0_22] : memref<1x256xbf16, #tpu.memory_space<vmem>>, vector<1x256xbf16>
    %29 = vector.broadcast %28 : vector<1x256xbf16> to vector<32x256xbf16>
    %30 = arith.addf %27, %29 : vector<32x256xbf16>
    %cst_23 = arith.constant 0.000000e+00 : bf16
    %31 = vector.broadcast %cst_23 : bf16 to vector<32x256xbf16>
    %32 = arith.maximumf %30, %31 : vector<32x256xbf16>
    %c0_24 = arith.constant 0 : index
    %c0_25 = arith.constant 0 : index
    %33 = vector.load %arg10[%c0_24, %c0_25] : memref<8x256xbf16, #tpu.memory_space<vmem>>, vector<8x256xbf16>
    %cst_26 = arith.constant dense<0.000000e+00> : vector<8x32xf32>
    %34 = tpu.matmul %33, %32, %cst_26 {dimension_numbers = #tpu.dot_dimension_numbers<[1], [1], [0], [0], [0, 0, 1, 0], [], []>} : vector<8x256xbf16>, vector<32x256xbf16>, vector<8x32xf32> -> vector<8x32xf32>
    %35 = vector.extract_strided_slice %34 {offsets = [0, 0], sizes = [1, 32], strides = [1, 1]} : vector<8x32xf32> to vector<1x32xf32>
    %c0_27 = arith.constant 0 : index
    %c0_28 = arith.constant 0 : index
    %36 = memref.load %arg11[%c0_27, %c0_28] : memref<1x1xf32, #tpu.memory_space<smem>>
    %37 = vector.broadcast %36 : f32 to vector<1x32xf32>
    %38 = arith.addf %35, %37 : vector<1x32xf32>
    %c0_29 = arith.constant 0 : index
    %c0_30 = arith.constant 0 : index
    %39 = vector.load %arg12[%c0_29, %c0_30] : memref<1x32xf32, #tpu.memory_space<vmem>>, vector<1x32xf32>
    tpu.vector_store %arg12[%c0_29, %c0_30], %38 {strides = array<i32>} : memref<1x32xf32, #tpu.memory_space<vmem>>, vector<1x32xf32>,
    return
  }
  func.func @transform_0(%arg0: i32) -> (i32, i32) {
    %c0_i32 = arith.constant 0 : i32
    %c0_i32_0 = arith.constant 0 : i32
    return %arg0, %c0_i32 : i32, i32
  }
  func.func @transform_1(%arg0: i32) -> (i32, i32) {
    %c0_i32 = arith.constant 0 : i32
    %c0_i32_0 = arith.constant 0 : i32
    %c0_i32_1 = arith.constant 0 : i32
    return %c0_i32, %c0_i32_0 : i32, i32
  }
  func.func @transform_2(%arg0: i32) -> (i32, i32) {
    %c0_i32 = arith.constant 0 : i32
    %c0_i32_0 = arith.constant 0 : i32
    %c0_i32_1 = arith.constant 0 : i32
    return %c0_i32, %c0_i32_0 : i32, i32
  }
  func.func @transform_3(%arg0: i32) -> (i32, i32) {
    %c0_i32 = arith.constant 0 : i32
    %c0_i32_0 = arith.constant 0 : i32
    %c0_i32_1 = arith.constant 0 : i32
    return %c0_i32, %c0_i32_0 : i32, i32
  }
  func.func @transform_4(%arg0: i32) -> (i32, i32) {
    %c0_i32 = arith.constant 0 : i32
    %c0_i32_0 = arith.constant 0 : i32
    %c0_i32_1 = arith.constant 0 : i32
    return %c0_i32, %c0_i32_0 : i32, i32
  }
  func.func @transform_5(%arg0: i32) -> (i32, i32) {
    %c0_i32 = arith.constant 0 : i32
    %c0_i32_0 = arith.constant 0 : i32
    %c0_i32_1 = arith.constant 0 : i32
    return %c0_i32, %c0_i32_0 : i32, i32
  }
  func.func @transform_6(%arg0: i32) -> (i32, i32) {
    %c0_i32 = arith.constant 0 : i32
    %c0_i32_0 = arith.constant 0 : i32
    %c0_i32_1 = arith.constant 0 : i32
    return %c0_i32, %c0_i32_0 : i32, i32
  }
  func.func @transform_7(%arg0: i32) -> (i32, i32) {
    %c0_i32 = arith.constant 0 : i32
    %c0_i32_0 = arith.constant 0 : i32
    %c0_i32_1 = arith.constant 0 : i32
    return %c0_i32, %c0_i32_0 : i32, i32
  }
  func.func @transform_8(%arg0: i32) -> (i32, i32) {
    %c0_i32 = arith.constant 0 : i32
    %c0_i32_0 = arith.constant 0 : i32
    %c0_i32_1 = arith.constant 0 : i32
    return %c0_i32, %c0_i32_0 : i32, i32
  }
  func.func @transform_9(%arg0: i32) -> (i32, i32) {
    %c0_i32 = arith.constant 0 : i32
    %c0_i32_0 = arith.constant 0 : i32
    %c0_i32_1 = arith.constant 0 : i32
    return %c0_i32, %c0_i32_0 : i32, i32
  }
  func.func @transform_10(%arg0: i32) -> (i32, i32) {
    %c0_i32 = arith.constant 0 : i32
    %c0_i32_0 = arith.constant 0 : i32
    %c0_i32_1 = arith.constant 0 : i32
    return %c0_i32, %c0_i32_0 : i32, i32
  }
  func.func @transform_11(%arg0: i32) -> (i32, i32) {
    %c0_i32 = arith.constant 0 : i32
    %c0_i32_0 = arith.constant 0 : i32
    return %c0_i32, %arg0 : i32, i32
  }
}

</mosaic_0001>

<llo_original>
// kernel: pendulum_net_forward.1
$region0: #{pendulum_net_forward.1}
  #allocation0 [shape = 'u32[]', space=smem, size = 0x4, offset = 0x4, fixed_abs, tag = 'smem constant byte address 0x4 - core index']
  #allocation1 [shape = 'u32[72,128]{1,0:T(1,128)}', space=vmem, size = 0x9000, scoped, tag = 'internal scratch']
  #allocation2 [shape = 'f32[1,1]{1,0:T(1,128)S(6)}', space=smem, size = 0x200, scoped, tag = 'scoped memory for pendulum_net_forward.1']
  %s0 = inlined_call_operand.vmem [shape: bf16[32,16], index: 0, kind: input, shape index: {}]
  %s1 = inlined_call_operand.vmem [shape: bf16[16,256], index: 1, kind: input, shape index: {}]
  %s2 = inlined_call_operand.vmem [shape: bf16[1,256], index: 2, kind: input, shape index: {}]
  %s3 = inlined_call_operand.vmem [shape: bf16[256,256], index: 3, kind: input, shape index: {}]
  %s4 = inlined_call_operand.vmem [shape: bf16[1,256], index: 4, kind: input, shape index: {}]
  %s5 = inlined_call_operand.vmem [shape: bf16[256,256], index: 5, kind: input, shape index: {}]
  %s6 = inlined_call_operand.vmem [shape: bf16[1,256], index: 6, kind: input, shape index: {}]
  %s7 = inlined_call_operand.vmem [shape: bf16[256,256], index: 7, kind: input, shape index: {}]
  %s8 = inlined_call_operand.vmem [shape: bf16[1,256], index: 8, kind: input, shape index: {}]
  %s9 = inlined_call_operand.vmem [shape: bf16[8,256], index: 9, kind: input, shape index: {}]
  %s10 = inlined_call_operand.<no memory space> [shape: f32[1,1], index: 10, kind: input, shape index: {}]
  %s11 = inlined_call_operand.hbm [shape: f32[1,32], index: 11, kind: output, shape index: {}]
  %s12 = sld [smem:[#allocation0]]
  $region54: #{pendulum_net_forward.1} parent=0
    _
  %s14 = ssub.s32 1, %s12
  %s15 = scalar_select 0, %s14, %s12
  %16 = sst [smem:[#allocation2]] %s10
  $region1: #{pendulum_net_forward.1} parent=0
    #allocation3 [shape = 'u8[512]{0}', space=vmem, size = 0x400, scoped, tag = 'output window, operand 0, single buffered']
    #allocation4 [shape = 's32[1]{0}', space=sflag, size = 0x4, scoped, tag = 'scoped memory for pendulum_net_forward.1']
    %17 = vsyncpa [#allocation4], 0
    // Predicated region
    $region2: #{pendulum_net_forward.1} parent=1 // pred_check
      _
    $region3: #{pendulum_net_forward.1} parent=1 // pred_check_branch
      %19 = sbr.rel (0) target = $region5
    $region4: #{pendulum_net_forward.1} parent=1 // pred_region
      _
    $region5: #{pendulum_net_forward.1} parent=1 // pred_fallthru
      _
    // Predicated region
    $region6: #{pendulum_net_forward.1} parent=1 // pred_check
      _
    $region7: #{pendulum_net_forward.1} parent=1 // pred_check_branch
      %21 = sbr.rel (0) target = $region9
    $region8: #{pendulum_net_forward.1} parent=1 // pred_region
      _
    $region9: #{pendulum_net_forward.1} parent=1 // pred_fallthru
      _
    // Predicated region
    $region10: #{pendulum_net_forward.1} parent=1 // pred_check
      _
    $region11: #{pendulum_net_forward.1} parent=1 // pred_check_branch
      %23 = sbr.rel (0) target = $region13
    $region12: #{pendulum_net_forward.1} parent=1 // pred_region
      _
    $region13: #{pendulum_net_forward.1} parent=1 // pred_fallthru
      _
    // Predicated region
    $region14: #{pendulum_net_forward.1} parent=1 // pred_check
      _
    $region15: #{pendulum_net_forward.1} parent=1 // pred_check_branch
      %25 = sbr.rel (0) target = $region17
    $region16: #{pendulum_net_forward.1} parent=1 // pred_region
      _
    $region17: #{pendulum_net_forward.1} parent=1 // pred_fallthru
      _
    // Predicated region
    $region18: #{pendulum_net_forward.1} parent=1 // pred_check
      _
    $region19: #{pendulum_net_forward.1} parent=1 // pred_check_branch
      %27 = sbr.rel (0) target = $region21
    $region20: #{pendulum_net_forward.1} parent=1 // pred_region
      _
    $region21: #{pendulum_net_forward.1} parent=1 // pred_fallthru
      _
    // Predicated region
    $region22: #{pendulum_net_forward.1} parent=1 // pred_check
      _
    $region23: #{pendulum_net_forward.1} parent=1 // pred_check_branch
      %29 = sbr.rel (0) target = $region25
    $region24: #{pendulum_net_forward.1} parent=1 // pred_region
      _
    $region25: #{pendulum_net_forward.1} parent=1 // pred_fallthru
      _
    // Predicated region
    $region26: #{pendulum_net_forward.1} parent=1 // pred_check
      _
    $region27: #{pendulum_net_forward.1} parent=1 // pred_check_branch
      %31 = sbr.rel (0) target = $region29
    $region28: #{pendulum_net_forward.1} parent=1 // pred_region
      _
    $region29: #{pendulum_net_forward.1} parent=1 // pred_fallthru
      _
    // Predicated region
    $region30: #{pendulum_net_forward.1} parent=1 // pred_check
      _
    $region31: #{pendulum_net_forward.1} parent=1 // pred_check_branch
      %33 = sbr.rel (0) target = $region33
    $region32: #{pendulum_net_forward.1} parent=1 // pred_region
      _
    $region33: #{pendulum_net_forward.1} parent=1 // pred_fallthru
      _
    // Predicated region
    $region34: #{pendulum_net_forward.1} parent=1 // pred_check
      _
    $region35: #{pendulum_net_forward.1} parent=1 // pred_check_branch
      %35 = sbr.rel (0) target = $region37
    $region36: #{pendulum_net_forward.1} parent=1 // pred_region
      _
    $region37: #{pendulum_net_forward.1} parent=1 // pred_fallthru
      _
    // Predicated region
    $region38: #{pendulum_net_forward.1} parent=1 // pred_check
      _
    $region39: #{pendulum_net_forward.1} parent=1 // pred_check_branch
      %37 = sbr.rel (0) target = $region41
    $region40: #{pendulum_net_forward.1} parent=1 // pred_region
      _
    $region41: #{pendulum_net_forward.1} parent=1 // pred_fallthru
      _
    // Predicated region
    $region42: #{pendulum_net_forward.1} parent=1 // pred_check
      _
    $region43: #{pendulum_net_forward.1} parent=1 // pred_check_branch
      %39 = sbr.rel (0) target = $region45
    $region44: #{pendulum_net_forward.1} parent=1 // pred_region
      _
    $region45: #{pendulum_net_forward.1} parent=1 // pred_fallthru
      _
    %v41 = vld [vmem:[%s0] sm:$0xf]
    %v42 = vld [vmem:[%s0 + $0x4] sm:$0xf]
    %v43 = vld [vmem:[%s0 + $0x8] sm:$0xf]
    %v44 = vld [vmem:[%s0 + $0xc] sm:$0xf]
    %v45 = vld [vmem:[%s1] sm:$0xff]
    %v46 = vld [vmem:[%s1 + $0x8] sm:$0xff]
    %v51 = vunpack.c.l.b16 %v41
    %v52 = vunpack.c.l.b16 %v42
    %v53 = vunpack.c.l.b16 %v43
    %v54 = vunpack.c.l.b16 %v44
    %v55 = vpack.c.b16 %v52, %v51
    %v56 = vpack.c.b16 %v54, %v53
    %v59 = vunpack.c.l.b16 %v45
    %v60 = vunpack.c.h.b16 %v45
    %v61 = vunpack.c.l.b16 %v46
    %v62 = vunpack.c.h.b16 %v46
    %v63 = vpack.c.b16 %v61, %v59
    %v64 = vpack.c.b16 %v62, %v60
    %vm67 = vcmask 130048
    %v69 = vsel %vm67, %v55, 0
    %v72 = vsel %vm67, %v56, 0
    %74 = vmatpush.bf16.msra.mxu0 0
    %75 = vmatpush.bf16.msra.mxu0 0
    %76 = vmatpush.bf16.msra.mxu0 0
    %77 = vmatpush.bf16.msra.mxu0 0
    %78 = vmatpush.bf16.msra.mxu0 0
    %79 = vmatpush.bf16.msra.mxu0 0
    %80 = vmatpush.bf16.msra.mxu0 0
    %81 = vmatpush.bf16.msra.mxu0 %v63
    %82 = vmatmul.bf16.gmra.mxu0 %v69
    %v83 = vpop.f32.mrf.mxu0
    %v84 = vadd.f32 0.0, %v83
    %v85 = vpop.f32.mrf.mxu0
    %v86 = vadd.f32 0.0, %v85
    %87 = vmatmul.bf16.gmra.mxu0 %v72
    %v88 = vpop.f32.mrf.mxu0
    %v89 = vadd.f32 0.0, %v88
    %v90 = vpop.f32.mrf.mxu0
    %v91 = vadd.f32 0.0, %v90
    %92 = vdwg.mxu0
    %93 = vmatpush.bf16.msra.mxu0 0
    %94 = vmatpush.bf16.msra.mxu0 0
    %95 = vmatpush.bf16.msra.mxu0 0
    %96 = vmatpush.bf16.msra.mxu0 0
    %97 = vmatpush.bf16.msra.mxu0 0
    %98 = vmatpush.bf16.msra.mxu0 0
    %99 = vmatpush.bf16.msra.mxu0 0
    %100 = vmatpush.bf16.msra.mxu0 %v64
    %101 = vmatmul.bf16.gmra.mxu0 %v69
    %v102 = vpop.f32.mrf.mxu0
    %v103 = vadd.f32 0.0, %v102
    %v104 = vpop.f32.mrf.mxu0
    %v105 = vadd.f32 0.0, %v104
    %106 = vmatmul.bf16.gmra.mxu0 %v72
    %v107 = vpop.f32.mrf.mxu0
    %v108 = vadd.f32 0.0, %v107
    %v109 = vpop.f32.mrf.mxu0
    %v110 = vadd.f32 0.0, %v109
    %111 = vdwg.mxu0
    %v112 = vpack.c.bf16 %v103, %v84
    %v113 = vpack.c.bf16 %v105, %v86
    %v114 = vpack.c.bf16 %v108, %v89
    %v115 = vpack.c.bf16 %v110, %v91
    %v116 = vld [vmem:[%s2] sm:$0x3]
    %118 = vst [vmem:[#allocation1] ss:$9 sm:$0xff] %v116
    %v119 = vld [vmem:[#allocation1] sm:$0xff]
    %v120 = vld [vmem:[#allocation1 + $0x9] sm:$0xff]
    %v121 = vpack.i.b16 %v119, %v119
    %v123 = vperm.slane %v121, 0
    %v124 = vpack.i.b16 %v120, %v120
    %v126 = vperm.slane %v124, 0
    %v127 = vunpack.c.l.bf16 %v112
    %v128 = vunpack.c.h.bf16 %v112
    %v129 = vunpack.c.l.bf16 %v113
    %v130 = vunpack.c.h.bf16 %v113
    %v131 = vunpack.c.l.bf16 %v114
    %v132 = vunpack.c.h.bf16 %v114
    %v133 = vunpack.c.l.bf16 %v115
    %v134 = vunpack.c.h.bf16 %v115
    %v135 = vunpack.c.l.bf16 %v123
    %v136 = vunpack.c.l.bf16 %v126
    %v137 = vadd.f32 %v127, %v135
    %v138 = vadd.f32 %v128, %v136
    %v139 = vadd.f32 %v129, %v135
    %v140 = vadd.f32 %v130, %v136
    %v141 = vadd.f32 %v131, %v135
    %v142 = vadd.f32 %v132, %v136
    %v143 = vadd.f32 %v133, %v135
    %v144 = vadd.f32 %v134, %v136
    %v145 = vpack.c.bf16 %v138, %v137
    %v146 = vpack.c.bf16 %v140, %v139
    %v147 = vpack.c.bf16 %v142, %v141
    %v148 = vpack.c.bf16 %v144, %v143
    %v149 = vunpack.c.l.bf16 %v145
    %v150 = vunpack.c.h.bf16 %v145
    %v151 = vunpack.c.l.bf16 %v146
    %v152 = vunpack.c.h.bf16 %v146
    %v153 = vunpack.c.l.bf16 %v147
    %v154 = vunpack.c.h.bf16 %v147
    %v155 = vunpack.c.l.bf16 %v148
    %v156 = vunpack.c.h.bf16 %v148
    %v157 = vmax.f32 %v149, 0.0
    %v158 = vmax.f32 %v150, 0.0
    %v159 = vmax.f32 %v151, 0.0
    %v160 = vmax.f32 %v152, 0.0
    %v161 = vmax.f32 %v153, 0.0
    %v162 = vmax.f32 %v154, 0.0
    %v163 = vmax.f32 %v155, 0.0
    %v164 = vmax.f32 %v156, 0.0
    %v165 = vpack.c.bf16 %v159, %v157
    %v166 = vpack.c.bf16 %v160, %v158
    %v167 = vpack.c.bf16 %v163, %v161
    %v168 = vpack.c.bf16 %v164, %v162
    %v169 = vld [vmem:[%s3] sm:$0xff]
    %v170 = vld [vmem:[%s3 + $0x8] sm:$0xff]
    %v171 = vld [vmem:[%s3 + $0x10] sm:$0xff]
    %v172 = vld [vmem:[%s3 + $0x18] sm:$0xff]
    %v173 = vld [vmem:[%s3 + $0x20] sm:$0xff]
    %v174 = vld [vmem:[%s3 + $0x28] sm:$0xff]
    %v175 = vld [vmem:[%s3 + $0x30] sm:$0xff]
    %v176 = vld [vmem:[%s3 + $0x38] sm:$0xff]
    %v177 = vld [vmem:[%s3 + $0x40] sm:$0xff]
    %v178 = vld [vmem:[%s3 + $0x48] sm:$0xff]
    %v179 = vld [vmem:[%s3 + $0x50] sm:$0xff]
    %v180 = vld [vmem:[%s3 + $0x58] sm:$0xff]
    %v181 = vld [vmem:[%s3 + $0x60] sm:$0xff]
    %v182 = vld [vmem:[%s3 + $0x68] sm:$0xff]
    %v183 = vld [vmem:[%s3 + $0x70] sm:$0xff]
    %v184 = vld [vmem:[%s3 + $0x78] sm:$0xff]
    %v185 = vld [vmem:[%s3 + $0x80] sm:$0xff]
    %v186 = vld [vmem:[%s3 + $0x88] sm:$0xff]
    %v187 = vld [vmem:[%s3 + $0x90] sm:$0xff]
    %v188 = vld [vmem:[%s3 + $0x98] sm:$0xff]
    %v189 = vld [vmem:[%s3 + $0xa0] sm:$0xff]
    %v190 = vld [vmem:[%s3 + $0xa8] sm:$0xff]
    %v191 = vld [vmem:[%s3 + $0xb0] sm:$0xff]
    %v192 = vld [vmem:[%s3 + $0xb8] sm:$0xff]
    %v193 = vld [vmem:[%s3 + $0xc0] sm:$0xff]
    %v194 = vld [vmem:[%s3 + $0xc8] sm:$0xff]
    %v195 = vld [vmem:[%s3 + $0xd0] sm:$0xff]
    %v196 = vld [vmem:[%s3 + $0xd8] sm:$0xff]
    %v197 = vld [vmem:[%s3 + $0xe0] sm:$0xff]
    %v198 = vld [vmem:[%s3 + $0xe8] sm:$0xff]
    %v199 = vld [vmem:[%s3 + $0xf0] sm:$0xff]
    %v200 = vld [vmem:[%s3 + $0xf8] sm:$0xff]
    %v233 = vunpack.c.l.b16 %v169
    %v234 = vunpack.c.h.b16 %v169
    %v235 = vunpack.c.l.b16 %v170
    %v236 = vunpack.c.h.b16 %v170
    %v237 = vunpack.c.l.b16 %v171
    %v238 = vunpack.c.h.b16 %v171
    %v239 = vunpack.c.l.b16 %v172
    %v240 = vunpack.c.h.b16 %v172
    %v241 = vunpack.c.l.b16 %v173
    %v242 = vunpack.c.h.b16 %v173
    %v243 = vunpack.c.l.b16 %v174
    %v244 = vunpack.c.h.b16 %v174
    %v245 = vunpack.c.l.b16 %v175
    %v246 = vunpack.c.h.b16 %v175
    %v247 = vunpack.c.l.b16 %v176
    %v248 = vunpack.c.h.b16 %v176
    %v249 = vunpack.c.l.b16 %v177
    %v250 = vunpack.c.h.b16 %v177
    %v251 = vunpack.c.l.b16 %v178
    %v252 = vunpack.c.h.b16 %v178
    %v253 = vunpack.c.l.b16 %v179
    %v254 = vunpack.c.h.b16 %v179
    %v255 = vunpack.c.l.b16 %v180
    %v256 = vunpack.c.h.b16 %v180
    %v257 = vunpack.c.l.b16 %v181
    %v258 = vunpack.c.h.b16 %v181
    %v259 = vunpack.c.l.b16 %v182
    %v260 = vunpack.c.h.b16 %v182
    %v261 = vunpack.c.l.b16 %v183
    %v262 = vunpack.c.h.b16 %v183
    %v263 = vunpack.c.l.b16 %v184
    %v264 = vunpack.c.h.b16 %v184
    %v265 = vunpack.c.l.b16 %v185
    %v266 = vunpack.c.h.b16 %v185
    %v267 = vunpack.c.l.b16 %v186
    %v268 = vunpack.c.h.b16 %v186
    %v269 = vunpack.c.l.b16 %v187
    %v270 = vunpack.c.h.b16 %v187
    %v271 = vunpack.c.l.b16 %v188
    %v272 = vunpack.c.h.b16 %v188
    %v273 = vunpack.c.l.b16 %v189
    %v274 = vunpack.c.h.b16 %v189
    %v275 = vunpack.c.l.b16 %v190
    %v276 = vunpack.c.h.b16 %v190
    %v277 = vunpack.c.l.b16 %v191
    %v278 = vunpack.c.h.b16 %v191
    %v279 = vunpack.c.l.b16 %v192
    %v280 = vunpack.c.h.b16 %v192
    %v281 = vunpack.c.l.b16 %v193
    %v282 = vunpack.c.h.b16 %v193
    %v283 = vunpack.c.l.b16 %v194
    %v284 = vunpack.c.h.b16 %v194
    %v285 = vunpack.c.l.b16 %v195
    %v286 = vunpack.c.h.b16 %v195
    %v287 = vunpack.c.l.b16 %v196
    %v288 = vunpack.c.h.b16 %v196
    %v289 = vunpack.c.l.b16 %v197
    %v290 = vunpack.c.h.b16 %v197
    %v291 = vunpack.c.l.b16 %v198
    %v292 = vunpack.c.h.b16 %v198
    %v293 = vunpack.c.l.b16 %v199
    %v294 = vunpack.c.h.b16 %v199
    %v295 = vunpack.c.l.b16 %v200
    %v296 = vunpack.c.h.b16 %v200
    %v297 = vpack.c.b16 %v235, %v233
    %v298 = vpack.c.b16 %v236, %v234
    %v299 = vpack.c.b16 %v239, %v237
    %v300 = vpack.c.b16 %v240, %v238
    %v301 = vpack.c.b16 %v243, %v241
    %v302 = vpack.c.b16 %v244, %v242
    %v303 = vpack.c.b16 %v247, %v245
    %v304 = vpack.c.b16 %v248, %v246
    %v305 = vpack.c.b16 %v251, %v249
    %v306 = vpack.c.b16 %v252, %v250
    %v307 = vpack.c.b16 %v255, %v253
    %v308 = vpack.c.b16 %v256, %v254
    %v309 = vpack.c.b16 %v259, %v257
    %v310 = vpack.c.b16 %v260, %v258
    %v311 = vpack.c.b16 %v263, %v261
    %v312 = vpack.c.b16 %v264, %v262
    %v313 = vpack.c.b16 %v267, %v265
    %v314 = vpack.c.b16 %v268, %v266
    %v315 = vpack.c.b16 %v271, %v269
    %v316 = vpack.c.b16 %v272, %v270
    %v317 = vpack.c.b16 %v275, %v273
    %v318 = vpack.c.b16 %v276, %v274
    %v319 = vpack.c.b16 %v279, %v277
    %v320 = vpack.c.b16 %v280, %v278
    %v321 = vpack.c.b16 %v283, %v281
    %v322 = vpack.c.b16 %v284, %v282
    %v323 = vpack.c.b16 %v287, %v285
    %v324 = vpack.c.b16 %v288, %v286
    %v325 = vpack.c.b16 %v291, %v289
    %v326 = vpack.c.b16 %v292, %v290
    %v327 = vpack.c.b16 %v295, %v293
    %v328 = vpack.c.b16 %v296, %v294
    %361 = vmatpush.bf16.msra.mxu0 %v311
    %362 = vmatpush.bf16.msra.mxu0 %v309
    %363 = vmatpush.bf16.msra.mxu0 %v307
    %364 = vmatpush.bf16.msra.mxu0 %v305
    %365 = vmatpush.bf16.msra.mxu0 %v303
    %366 = vmatpush.bf16.msra.mxu0 %v301
    %367 = vmatpush.bf16.msra.mxu0 %v299
    %368 = vmatpush.bf16.msra.mxu0 %v297
    %369 = vmatmul.bf16.gmra.mxu0 %v165
    %v370 = vpop.f32.mrf.mxu0
    %v371 = vadd.f32 0.0, %v370
    %v372 = vpop.f32.mrf.mxu0
    %v373 = vadd.f32 0.0, %v372
    %374 = vmatmul.bf16.gmra.mxu0 %v167
    %v375 = vpop.f32.mrf.mxu0
    %v376 = vadd.f32 0.0, %v375
    %v377 = vpop.f32.mrf.mxu0
    %v378 = vadd.f32 0.0, %v377
    %379 = vdwg.mxu0
    %380 = vmatpush.bf16.msra.mxu0 %v327
    %381 = vmatpush.bf16.msra.mxu0 %v325
    %382 = vmatpush.bf16.msra.mxu0 %v323
    %383 = vmatpush.bf16.msra.mxu0 %v321
    %384 = vmatpush.bf16.msra.mxu0 %v319
    %385 = vmatpush.bf16.msra.mxu0 %v317
    %386 = vmatpush.bf16.msra.mxu0 %v315
    %387 = vmatpush.bf16.msra.mxu0 %v313
    %388 = vmatmul.bf16.gmra.mxu0 %v166
    %v389 = vpop.f32.mrf.mxu0
    %v390 = vadd.f32 %v371, %v389
    %v391 = vpop.f32.mrf.mxu0
    %v392 = vadd.f32 %v373, %v391
    %393 = vmatmul.bf16.gmra.mxu0 %v168
    %v394 = vpop.f32.mrf.mxu0
    %v395 = vadd.f32 %v376, %v394
    %v396 = vpop.f32.mrf.mxu0
    %v397 = vadd.f32 %v378, %v396
    %398 = vdwg.mxu0
    %399 = vmatpush.bf16.msra.mxu0 %v312
    %400 = vmatpush.bf16.msra.mxu0 %v310
    %401 = vmatpush.bf16.msra.mxu0 %v308
    %402 = vmatpush.bf16.msra.mxu0 %v306
    %403 = vmatpush.bf16.msra.mxu0 %v304
    %404 = vmatpush.bf16.msra.mxu0 %v302
    %405 = vmatpush.bf16.msra.mxu0 %v300
    %406 = vmatpush.bf16.msra.mxu0 %v298
    %407 = vmatmul.bf16.gmra.mxu0 %v165
    %v408 = vpop.f32.mrf.mxu0
    %v409 = vadd.f32 0.0, %v408
    %v410 = vpop.f32.mrf.mxu0
    %v411 = vadd.f32 0.0, %v410
    %412 = vmatmul.bf16.gmra.mxu0 %v167
    %v413 = vpop.f32.mrf.mxu0
    %v414 = vadd.f32 0.0, %v413
    %v415 = vpop.f32.mrf.mxu0
    %v416 = vadd.f32 0.0, %v415
    %417 = vdwg.mxu0
    %418 = vmatpush.bf16.msra.mxu0 %v328
    %419 = vmatpush.bf16.msra.mxu0 %v326
    %420 = vmatpush.bf16.msra.mxu0 %v324
    %421 = vmatpush.bf16.msra.mxu0 %v322
    %422 = vmatpush.bf16.msra.mxu0 %v320
    %423 = vmatpush.bf16.msra.mxu0 %v318
    %424 = vmatpush.bf16.msra.mxu0 %v316
    %425 = vmatpush.bf16.msra.mxu0 %v314
    %426 = vmatmul.bf16.gmra.mxu0 %v166
    %v427 = vpop.f32.mrf.mxu0
    %v428 = vadd.f32 %v409, %v427
    %v429 = vpop.f32.mrf.mxu0
    %v430 = vadd.f32 %v411, %v429
    %431 = vmatmul.bf16.gmra.mxu0 %v168
    %v432 = vpop.f32.mrf.mxu0
    %v433 = vadd.f32 %v414, %v432
    %v434 = vpop.f32.mrf.mxu0
    %v435 = vadd.f32 %v416, %v434
    %436 = vdwg.mxu0
    %v437 = vpack.c.bf16 %v428, %v390
    %v438 = vpack.c.bf16 %v430, %v392
    %v439 = vpack.c.bf16 %v433, %v395
    %v440 = vpack.c.bf16 %v435, %v397
    %v441 = vld [vmem:[%s4] sm:$0x3]
    %443 = vst [vmem:[#allocation1] ss:$9 sm:$0xff] %v441
    %v444 = vld [vmem:[#allocation1] sm:$0xff]
    %v445 = vld [vmem:[#allocation1 + $0x9] sm:$0xff]
    %v446 = vpack.i.b16 %v444, %v444
    %v448 = vperm.slane %v446, 0
    %v449 = vpack.i.b16 %v445, %v445
    %v451 = vperm.slane %v449, 0
    %v452 = vunpack.c.l.bf16 %v437
    %v453 = vunpack.c.h.bf16 %v437
    %v454 = vunpack.c.l.bf16 %v438
    %v455 = vunpack.c.h.bf16 %v438
    %v456 = vunpack.c.l.bf16 %v439
    %v457 = vunpack.c.h.bf16 %v439
    %v458 = vunpack.c.l.bf16 %v440
    %v459 = vunpack.c.h.bf16 %v440
    %v460 = vunpack.c.l.bf16 %v448
    %v461 = vunpack.c.l.bf16 %v451
    %v462 = vadd.f32 %v452, %v460
    %v463 = vadd.f32 %v453, %v461
    %v464 = vadd.f32 %v454, %v460
    %v465 = vadd.f32 %v455, %v461
    %v466 = vadd.f32 %v456, %v460
    %v467 = vadd.f32 %v457, %v461
    %v468 = vadd.f32 %v458, %v460
    %v469 = vadd.f32 %v459, %v461
    %v470 = vpack.c.bf16 %v463, %v462
    %v471 = vpack.c.bf16 %v465, %v464
    %v472 = vpack.c.bf16 %v467, %v466
    %v473 = vpack.c.bf16 %v469, %v468
    %v474 = vunpack.c.l.bf16 %v470
    %v475 = vunpack.c.h.bf16 %v470
    %v476 = vunpack.c.l.bf16 %v471
    %v477 = vunpack.c.h.bf16 %v471
    %v478 = vunpack.c.l.bf16 %v472
    %v479 = vunpack.c.h.bf16 %v472
    %v480 = vunpack.c.l.bf16 %v473
    %v481 = vunpack.c.h.bf16 %v473
    %v482 = vmax.f32 %v474, 0.0
    %v483 = vmax.f32 %v475, 0.0
    %v484 = vmax.f32 %v476, 0.0
    %v485 = vmax.f32 %v477, 0.0
    %v486 = vmax.f32 %v478, 0.0
    %v487 = vmax.f32 %v479, 0.0
    %v488 = vmax.f32 %v480, 0.0
    %v489 = vmax.f32 %v481, 0.0
    %v490 = vpack.c.bf16 %v484, %v482
    %v491 = vpack.c.bf16 %v485, %v483
    %v492 = vpack.c.bf16 %v488, %v486
    %v493 = vpack.c.bf16 %v489, %v487
    %v494 = vld [vmem:[%s5] sm:$0xff]
    %v495 = vld [vmem:[%s5 + $0x8] sm:$0xff]
    %v496 = vld [vmem:[%s5 + $0x10] sm:$0xff]
    %v497 = vld [vmem:[%s5 + $0x18] sm:$0xff]
    %v498 = vld [vmem:[%s5 + $0x20] sm:$0xff]
    %v499 = vld [vmem:[%s5 + $0x28] sm:$0xff]
    %v500 = vld [vmem:[%s5 + $0x30] sm:$0xff]
    %v501 = vld [vmem:[%s5 + $0x38] sm:$0xff]
    %v502 = vld [vmem:[%s5 + $0x40] sm:$0xff]
    %v503 = vld [vmem:[%s5 + $0x48] sm:$0xff]
    %v504 = vld [vmem:[%s5 + $0x50] sm:$0xff]
    %v505 = vld [vmem:[%s5 + $0x58] sm:$0xff]
    %v506 = vld [vmem:[%s5 + $0x60] sm:$0xff]
    %v507 = vld [vmem:[%s5 + $0x68] sm:$0xff]
    %v508 = vld [vmem:[%s5 + $0x70] sm:$0xff]
    %v509 = vld [vmem:[%s5 + $0x78] sm:$0xff]
    %v510 = vld [vmem:[%s5 + $0x80] sm:$0xff]
    %v511 = vld [vmem:[%s5 + $0x88] sm:$0xff]
    %v512 = vld [vmem:[%s5 + $0x90] sm:$0xff]
    %v513 = vld [vmem:[%s5 + $0x98] sm:$0xff]
    %v514 = vld [vmem:[%s5 + $0xa0] sm:$0xff]
    %v515 = vld [vmem:[%s5 + $0xa8] sm:$0xff]
    %v516 = vld [vmem:[%s5 + $0xb0] sm:$0xff]
    %v517 = vld [vmem:[%s5 + $0xb8] sm:$0xff]
    %v518 = vld [vmem:[%s5 + $0xc0] sm:$0xff]
    %v519 = vld [vmem:[%s5 + $0xc8] sm:$0xff]
    %v520 = vld [vmem:[%s5 + $0xd0] sm:$0xff]
    %v521 = vld [vmem:[%s5 + $0xd8] sm:$0xff]
    %v522 = vld [vmem:[%s5 + $0xe0] sm:$0xff]
    %v523 = vld [vmem:[%s5 + $0xe8] sm:$0xff]
    %v524 = vld [vmem:[%s5 + $0xf0] sm:$0xff]
    %v525 = vld [vmem:[%s5 + $0xf8] sm:$0xff]
    %v558 = vunpack.c.l.b16 %v494
    %v559 = vunpack.c.h.b16 %v494
    %v560 = vunpack.c.l.b16 %v495
    %v561 = vunpack.c.h.b16 %v495
    %v562 = vunpack.c.l.b16 %v496
    %v563 = vunpack.c.h.b16 %v496
    %v564 = vunpack.c.l.b16 %v497
    %v565 = vunpack.c.h.b16 %v497
    %v566 = vunpack.c.l.b16 %v498
    %v567 = vunpack.c.h.b16 %v498
    %v568 = vunpack.c.l.b16 %v499
    %v569 = vunpack.c.h.b16 %v499
    %v570 = vunpack.c.l.b16 %v500
    %v571 = vunpack.c.h.b16 %v500
    %v572 = vunpack.c.l.b16 %v501
    %v573 = vunpack.c.h.b16 %v501
    %v574 = vunpack.c.l.b16 %v502
    %v575 = vunpack.c.h.b16 %v502
    %v576 = vunpack.c.l.b16 %v503
    %v577 = vunpack.c.h.b16 %v503
    %v578 = vunpack.c.l.b16 %v504
    %v579 = vunpack.c.h.b16 %v504
    %v580 = vunpack.c.l.b16 %v505
    %v581 = vunpack.c.h.b16 %v505
    %v582 = vunpack.c.l.b16 %v506
    %v583 = vunpack.c.h.b16 %v506
    %v584 = vunpack.c.l.b16 %v507
    %v585 = vunpack.c.h.b16 %v507
    %v586 = vunpack.c.l.b16 %v508
    %v587 = vunpack.c.h.b16 %v508
    %v588 = vunpack.c.l.b16 %v509
    %v589 = vunpack.c.h.b16 %v509
    %v590 = vunpack.c.l.b16 %v510
    %v591 = vunpack.c.h.b16 %v510
    %v592 = vunpack.c.l.b16 %v511
    %v593 = vunpack.c.h.b16 %v511
    %v594 = vunpack.c.l.b16 %v512
    %v595 = vunpack.c.h.b16 %v512
    %v596 = vunpack.c.l.b16 %v513
    %v597 = vunpack.c.h.b16 %v513
    %v598 = vunpack.c.l.b16 %v514
    %v599 = vunpack.c.h.b16 %v514
    %v600 = vunpack.c.l.b16 %v515
    %v601 = vunpack.c.h.b16 %v515
    %v602 = vunpack.c.l.b16 %v516
    %v603 = vunpack.c.h.b16 %v516
    %v604 = vunpack.c.l.b16 %v517
    %v605 = vunpack.c.h.b16 %v517
    %v606 = vunpack.c.l.b16 %v518
    %v607 = vunpack.c.h.b16 %v518
    %v608 = vunpack.c.l.b16 %v519
    %v609 = vunpack.c.h.b16 %v519
    %v610 = vunpack.c.l.b16 %v520
    %v611 = vunpack.c.h.b16 %v520
    %v612 = vunpack.c.l.b16 %v521
    %v613 = vunpack.c.h.b16 %v521
    %v614 = vunpack.c.l.b16 %v522
    %v615 = vunpack.c.h.b16 %v522
    %v616 = vunpack.c.l.b16 %v523
    %v617 = vunpack.c.h.b16 %v523
    %v618 = vunpack.c.l.b16 %v524
    %v619 = vunpack.c.h.b16 %v524
    %v620 = vunpack.c.l.b16 %v525
    %v621 = vunpack.c.h.b16 %v525
    %v622 = vpack.c.b16 %v560, %v558
    %v623 = vpack.c.b16 %v561, %v559
    %v624 = vpack.c.b16 %v564, %v562
    %v625 = vpack.c.b16 %v565, %v563
    %v626 = vpack.c.b16 %v568, %v566
    %v627 = vpack.c.b16 %v569, %v567
    %v628 = vpack.c.b16 %v572, %v570
    %v629 = vpack.c.b16 %v573, %v571
    %v630 = vpack.c.b16 %v576, %v574
    %v631 = vpack.c.b16 %v577, %v575
    %v632 = vpack.c.b16 %v580, %v578
    %v633 = vpack.c.b16 %v581, %v579
    %v634 = vpack.c.b16 %v584, %v582
    %v635 = vpack.c.b16 %v585, %v583
    %v636 = vpack.c.b16 %v588, %v586
    %v637 = vpack.c.b16 %v589, %v587
    %v638 = vpack.c.b16 %v592, %v590
    %v639 = vpack.c.b16 %v593, %v591
    %v640 = vpack.c.b16 %v596, %v594
    %v641 = vpack.c.b16 %v597, %v595
    %v642 = vpack.c.b16 %v600, %v598
    %v643 = vpack.c.b16 %v601, %v599
    %v644 = vpack.c.b16 %v604, %v602
    %v645 = vpack.c.b16 %v605, %v603
    %v646 = vpack.c.b16 %v608, %v606
    %v647 = vpack.c.b16 %v609, %v607
    %v648 = vpack.c.b16 %v612, %v610
    %v649 = vpack.c.b16 %v613, %v611
    %v650 = vpack.c.b16 %v616, %v614
    %v651 = vpack.c.b16 %v617, %v615
    %v652 = vpack.c.b16 %v620, %v618
    %v653 = vpack.c.b16 %v621, %v619
    %686 = vmatpush.bf16.msra.mxu0 %v636
    %687 = vmatpush.bf16.msra.mxu0 %v634
    %688 = vmatpush.bf16.msra.mxu0 %v632
    %689 = vmatpush.bf16.msra.mxu0 %v630
    %690 = vmatpush.bf16.msra.mxu0 %v628
    %691 = vmatpush.bf16.msra.mxu0 %v626
    %692 = vmatpush.bf16.msra.mxu0 %v624
    %693 = vmatpush.bf16.msra.mxu0 %v622
    %694 = vmatmul.bf16.gmra.mxu0 %v490
    %v695 = vpop.f32.mrf.mxu0
    %v696 = vadd.f32 0.0, %v695
    %v697 = vpop.f32.mrf.mxu0
    %v698 = vadd.f32 0.0, %v697
    %699 = vmatmul.bf16.gmra.mxu0 %v492
    %v700 = vpop.f32.mrf.mxu0
    %v701 = vadd.f32 0.0, %v700
    %v702 = vpop.f32.mrf.mxu0
    %v703 = vadd.f32 0.0, %v702
    %704 = vdwg.mxu0
    %705 = vmatpush.bf16.msra.mxu0 %v652
    %706 = vmatpush.bf16.msra.mxu0 %v650
    %707 = vmatpush.bf16.msra.mxu0 %v648
    %708 = vmatpush.bf16.msra.mxu0 %v646
    %709 = vmatpush.bf16.msra.mxu0 %v644
    %710 = vmatpush.bf16.msra.mxu0 %v642
    %711 = vmatpush.bf16.msra.mxu0 %v640
    %712 = vmatpush.bf16.msra.mxu0 %v638
    %713 = vmatmul.bf16.gmra.mxu0 %v491
    %v714 = vpop.f32.mrf.mxu0
    %v715 = vadd.f32 %v696, %v714
    %v716 = vpop.f32.mrf.mxu0
    %v717 = vadd.f32 %v698, %v716
    %718 = vmatmul.bf16.gmra.mxu0 %v493
    %v719 = vpop.f32.mrf.mxu0
    %v720 = vadd.f32 %v701, %v719
    %v721 = vpop.f32.mrf.mxu0
    %v722 = vadd.f32 %v703, %v721
    %723 = vdwg.mxu0
    %724 = vmatpush.bf16.msra.mxu0 %v637
    %725 = vmatpush.bf16.msra.mxu0 %v635
    %726 = vmatpush.bf16.msra.mxu0 %v633
    %727 = vmatpush.bf16.msra.mxu0 %v631
    %728 = vmatpush.bf16.msra.mxu0 %v629
    %729 = vmatpush.bf16.msra.mxu0 %v627
    %730 = vmatpush.bf16.msra.mxu0 %v625
    %731 = vmatpush.bf16.msra.mxu0 %v623
    %732 = vmatmul.bf16.gmra.mxu0 %v490
    %v733 = vpop.f32.mrf.mxu0
    %v734 = vadd.f32 0.0, %v733
    %v735 = vpop.f32.mrf.mxu0
    %v736 = vadd.f32 0.0, %v735
    %737 = vmatmul.bf16.gmra.mxu0 %v492
    %v738 = vpop.f32.mrf.mxu0
    %v739 = vadd.f32 0.0, %v738
    %v740 = vpop.f32.mrf.mxu0
    %v741 = vadd.f32 0.0, %v740
    %742 = vdwg.mxu0
    %743 = vmatpush.bf16.msra.mxu0 %v653
    %744 = vmatpush.bf16.msra.mxu0 %v651
    %745 = vmatpush.bf16.msra.mxu0 %v649
    %746 = vmatpush.bf16.msra.mxu0 %v647
    %747 = vmatpush.bf16.msra.mxu0 %v645
    %748 = vmatpush.bf16.msra.mxu0 %v643
    %749 = vmatpush.bf16.msra.mxu0 %v641
    %750 = vmatpush.bf16.msra.mxu0 %v639
    %751 = vmatmul.bf16.gmra.mxu0 %v491
    %v752 = vpop.f32.mrf.mxu0
    %v753 = vadd.f32 %v734, %v752
    %v754 = vpop.f32.mrf.mxu0
    %v755 = vadd.f32 %v736, %v754
    %756 = vmatmul.bf16.gmra.mxu0 %v493
    %v757 = vpop.f32.mrf.mxu0
    %v758 = vadd.f32 %v739, %v757
    %v759 = vpop.f32.mrf.mxu0
    %v760 = vadd.f32 %v741, %v759
    %761 = vdwg.mxu0
    %v762 = vpack.c.bf16 %v753, %v715
    %v763 = vpack.c.bf16 %v755, %v717
    %v764 = vpack.c.bf16 %v758, %v720
    %v765 = vpack.c.bf16 %v760, %v722
    %v766 = vld [vmem:[%s6] sm:$0x3]
    %768 = vst [vmem:[#allocation1] ss:$9 sm:$0xff] %v766
    %v769 = vld [vmem:[#allocation1] sm:$0xff]
    %v770 = vld [vmem:[#allocation1 + $0x9] sm:$0xff]
    %v771 = vpack.i.b16 %v769, %v769
    %v773 = vperm.slane %v771, 0
    %v774 = vpack.i.b16 %v770, %v770
    %v776 = vperm.slane %v774, 0
    %v777 = vunpack.c.l.bf16 %v762
    %v778 = vunpack.c.h.bf16 %v762
    %v779 = vunpack.c.l.bf16 %v763
    %v780 = vunpack.c.h.bf16 %v763
    %v781 = vunpack.c.l.bf16 %v764
    %v782 = vunpack.c.h.bf16 %v764
    %v783 = vunpack.c.l.bf16 %v765
    %v784 = vunpack.c.h.bf16 %v765
    %v785 = vunpack.c.l.bf16 %v773
    %v786 = vunpack.c.l.bf16 %v776
    %v787 = vadd.f32 %v777, %v785
    %v788 = vadd.f32 %v778, %v786
    %v789 = vadd.f32 %v779, %v785
    %v790 = vadd.f32 %v780, %v786
    %v791 = vadd.f32 %v781, %v785
    %v792 = vadd.f32 %v782, %v786
    %v793 = vadd.f32 %v783, %v785
    %v794 = vadd.f32 %v784, %v786
    %v795 = vpack.c.bf16 %v788, %v787
    %v796 = vpack.c.bf16 %v790, %v789
    %v797 = vpack.c.bf16 %v792, %v791
    %v798 = vpack.c.bf16 %v794, %v793
    %v799 = vunpack.c.l.bf16 %v795
    %v800 = vunpack.c.h.bf16 %v795
    %v801 = vunpack.c.l.bf16 %v796
    %v802 = vunpack.c.h.bf16 %v796
    %v803 = vunpack.c.l.bf16 %v797
    %v804 = vunpack.c.h.bf16 %v797
    %v805 = vunpack.c.l.bf16 %v798
    %v806 = vunpack.c.h.bf16 %v798
    %v807 = vmax.f32 %v799, 0.0
    %v808 = vmax.f32 %v800, 0.0
    %v809 = vmax.f32 %v801, 0.0
    %v810 = vmax.f32 %v802, 0.0
    %v811 = vmax.f32 %v803, 0.0
    %v812 = vmax.f32 %v804, 0.0
    %v813 = vmax.f32 %v805, 0.0
    %v814 = vmax.f32 %v806, 0.0
    %v815 = vpack.c.bf16 %v809, %v807
    %v816 = vpack.c.bf16 %v810, %v808
    %v817 = vpack.c.bf16 %v813, %v811
    %v818 = vpack.c.bf16 %v814, %v812
    %v819 = vld [vmem:[%s7] sm:$0xff]
    %v820 = vld [vmem:[%s7 + $0x8] sm:$0xff]
    %v821 = vld [vmem:[%s7 + $0x10] sm:$0xff]
    %v822 = vld [vmem:[%s7 + $0x18] sm:$0xff]
    %v823 = vld [vmem:[%s7 + $0x20] sm:$0xff]
    %v824 = vld [vmem:[%s7 + $0x28] sm:$0xff]
    %v825 = vld [vmem:[%s7 + $0x30] sm:$0xff]
    %v826 = vld [vmem:[%s7 + $0x38] sm:$0xff]
    %v827 = vld [vmem:[%s7 + $0x40] sm:$0xff]
    %v828 = vld [vmem:[%s7 + $0x48] sm:$0xff]
    %v829 = vld [vmem:[%s7 + $0x50] sm:$0xff]
    %v830 = vld [vmem:[%s7 + $0x58] sm:$0xff]
    %v831 = vld [vmem:[%s7 + $0x60] sm:$0xff]
    %v832 = vld [vmem:[%s7 + $0x68] sm:$0xff]
    %v833 = vld [vmem:[%s7 + $0x70] sm:$0xff]
    %v834 = vld [vmem:[%s7 + $0x78] sm:$0xff]
    %v835 = vld [vmem:[%s7 + $0x80] sm:$0xff]
    %v836 = vld [vmem:[%s7 + $0x88] sm:$0xff]
    %v837 = vld [vmem:[%s7 + $0x90] sm:$0xff]
    %v838 = vld [vmem:[%s7 + $0x98] sm:$0xff]
    %v839 = vld [vmem:[%s7 + $0xa0] sm:$0xff]
    %v840 = vld [vmem:[%s7 + $0xa8] sm:$0xff]
    %v841 = vld [vmem:[%s7 + $0xb0] sm:$0xff]
    %v842 = vld [vmem:[%s7 + $0xb8] sm:$0xff]
    %v843 = vld [vmem:[%s7 + $0xc0] sm:$0xff]
    %v844 = vld [vmem:[%s7 + $0xc8] sm:$0xff]
    %v845 = vld [vmem:[%s7 + $0xd0] sm:$0xff]
    %v846 = vld [vmem:[%s7 + $0xd8] sm:$0xff]
    %v847 = vld [vmem:[%s7 + $0xe0] sm:$0xff]
    %v848 = vld [vmem:[%s7 + $0xe8] sm:$0xff]
    %v849 = vld [vmem:[%s7 + $0xf0] sm:$0xff]
    %v850 = vld [vmem:[%s7 + $0xf8] sm:$0xff]
    %v883 = vunpack.c.l.b16 %v819
    %v884 = vunpack.c.h.b16 %v819
    %v885 = vunpack.c.l.b16 %v820
    %v886 = vunpack.c.h.b16 %v820
    %v887 = vunpack.c.l.b16 %v821
    %v888 = vunpack.c.h.b16 %v821
    %v889 = vunpack.c.l.b16 %v822
    %v890 = vunpack.c.h.b16 %v822
    %v891 = vunpack.c.l.b16 %v823
    %v892 = vunpack.c.h.b16 %v823
    %v893 = vunpack.c.l.b16 %v824
    %v894 = vunpack.c.h.b16 %v824
    %v895 = vunpack.c.l.b16 %v825
    %v896 = vunpack.c.h.b16 %v825
    %v897 = vunpack.c.l.b16 %v826
    %v898 = vunpack.c.h.b16 %v826
    %v899 = vunpack.c.l.b16 %v827
    %v900 = vunpack.c.h.b16 %v827
    %v901 = vunpack.c.l.b16 %v828
    %v902 = vunpack.c.h.b16 %v828
    %v903 = vunpack.c.l.b16 %v829
    %v904 = vunpack.c.h.b16 %v829
    %v905 = vunpack.c.l.b16 %v830
    %v906 = vunpack.c.h.b16 %v830
    %v907 = vunpack.c.l.b16 %v831
    %v908 = vunpack.c.h.b16 %v831
    %v909 = vunpack.c.l.b16 %v832
    %v910 = vunpack.c.h.b16 %v832
    %v911 = vunpack.c.l.b16 %v833
    %v912 = vunpack.c.h.b16 %v833
    %v913 = vunpack.c.l.b16 %v834
    %v914 = vunpack.c.h.b16 %v834
    %v915 = vunpack.c.l.b16 %v835
    %v916 = vunpack.c.h.b16 %v835
    %v917 = vunpack.c.l.b16 %v836
    %v918 = vunpack.c.h.b16 %v836
    %v919 = vunpack.c.l.b16 %v837
    %v920 = vunpack.c.h.b16 %v837
    %v921 = vunpack.c.l.b16 %v838
    %v922 = vunpack.c.h.b16 %v838
    %v923 = vunpack.c.l.b16 %v839
    %v924 = vunpack.c.h.b16 %v839
    %v925 = vunpack.c.l.b16 %v840
    %v926 = vunpack.c.h.b16 %v840
    %v927 = vunpack.c.l.b16 %v841
    %v928 = vunpack.c.h.b16 %v841
    %v929 = vunpack.c.l.b16 %v842
    %v930 = vunpack.c.h.b16 %v842
    %v931 = vunpack.c.l.b16 %v843
    %v932 = vunpack.c.h.b16 %v843
    %v933 = vunpack.c.l.b16 %v844
    %v934 = vunpack.c.h.b16 %v844
    %v935 = vunpack.c.l.b16 %v845
    %v936 = vunpack.c.h.b16 %v845
    %v937 = vunpack.c.l.b16 %v846
    %v938 = vunpack.c.h.b16 %v846
    %v939 = vunpack.c.l.b16 %v847
    %v940 = vunpack.c.h.b16 %v847
    %v941 = vunpack.c.l.b16 %v848
    %v942 = vunpack.c.h.b16 %v848
    %v943 = vunpack.c.l.b16 %v849
    %v944 = vunpack.c.h.b16 %v849
    %v945 = vunpack.c.l.b16 %v850
    %v946 = vunpack.c.h.b16 %v850
    %v947 = vpack.c.b16 %v885, %v883
    %v948 = vpack.c.b16 %v886, %v884
    %v949 = vpack.c.b16 %v889, %v887
    %v950 = vpack.c.b16 %v890, %v888
    %v951 = vpack.c.b16 %v893, %v891
    %v952 = vpack.c.b16 %v894, %v892
    %v953 = vpack.c.b16 %v897, %v895
    %v954 = vpack.c.b16 %v898, %v896
    %v955 = vpack.c.b16 %v901, %v899
    %v956 = vpack.c.b16 %v902, %v900
    %v957 = vpack.c.b16 %v905, %v903
    %v958 = vpack.c.b16 %v906, %v904
    %v959 = vpack.c.b16 %v909, %v907
    %v960 = vpack.c.b16 %v910, %v908
    %v961 = vpack.c.b16 %v913, %v911
    %v962 = vpack.c.b16 %v914, %v912
    %v963 = vpack.c.b16 %v917, %v915
    %v964 = vpack.c.b16 %v918, %v916
    %v965 = vpack.c.b16 %v921, %v919
    %v966 = vpack.c.b16 %v922, %v920
    %v967 = vpack.c.b16 %v925, %v923
    %v968 = vpack.c.b16 %v926, %v924
    %v969 = vpack.c.b16 %v929, %v927
    %v970 = vpack.c.b16 %v930, %v928
    %v971 = vpack.c.b16 %v933, %v931
    %v972 = vpack.c.b16 %v934, %v932
    %v973 = vpack.c.b16 %v937, %v935
    %v974 = vpack.c.b16 %v938, %v936
    %v975 = vpack.c.b16 %v941, %v939
    %v976 = vpack.c.b16 %v942, %v940
    %v977 = vpack.c.b16 %v945, %v943
    %v978 = vpack.c.b16 %v946, %v944
    %1011 = vmatpush.bf16.msra.mxu0 %v961
    %1012 = vmatpush.bf16.msra.mxu0 %v959
    %1013 = vmatpush.bf16.msra.mxu0 %v957
    %1014 = vmatpush.bf16.msra.mxu0 %v955
    %1015 = vmatpush.bf16.msra.mxu0 %v953
    %1016 = vmatpush.bf16.msra.mxu0 %v951
    %1017 = vmatpush.bf16.msra.mxu0 %v949
    %1018 = vmatpush.bf16.msra.mxu0 %v947
    %1019 = vmatmul.bf16.gmra.mxu0 %v815
    %v1020 = vpop.f32.mrf.mxu0
    %v1021 = vadd.f32 0.0, %v1020
    %v1022 = vpop.f32.mrf.mxu0
    %v1023 = vadd.f32 0.0, %v1022
    %1024 = vmatmul.bf16.gmra.mxu0 %v817
    %v1025 = vpop.f32.mrf.mxu0
    %v1026 = vadd.f32 0.0, %v1025
    %v1027 = vpop.f32.mrf.mxu0
    %v1028 = vadd.f32 0.0, %v1027
    %1029 = vdwg.mxu0
    %1030 = vmatpush.bf16.msra.mxu0 %v977
    %1031 = vmatpush.bf16.msra.mxu0 %v975
    %1032 = vmatpush.bf16.msra.mxu0 %v973
    %1033 = vmatpush.bf16.msra.mxu0 %v971
    %1034 = vmatpush.bf16.msra.mxu0 %v969
    %1035 = vmatpush.bf16.msra.mxu0 %v967
    %1036 = vmatpush.bf16.msra.mxu0 %v965
    %1037 = vmatpush.bf16.msra.mxu0 %v963
    %1038 = vmatmul.bf16.gmra.mxu0 %v816
    %v1039 = vpop.f32.mrf.mxu0
    %v1040 = vadd.f32 %v1021, %v1039
    %v1041 = vpop.f32.mrf.mxu0
    %v1042 = vadd.f32 %v1023, %v1041
    %1043 = vmatmul.bf16.gmra.mxu0 %v818
    %v1044 = vpop.f32.mrf.mxu0
    %v1045 = vadd.f32 %v1026, %v1044
    %v1046 = vpop.f32.mrf.mxu0
    %v1047 = vadd.f32 %v1028, %v1046
    %1048 = vdwg.mxu0
    %1049 = vmatpush.bf16.msra.mxu0 %v962
    %1050 = vmatpush.bf16.msra.mxu0 %v960
    %1051 = vmatpush.bf16.msra.mxu0 %v958
    %1052 = vmatpush.bf16.msra.mxu0 %v956
    %1053 = vmatpush.bf16.msra.mxu0 %v954
    %1054 = vmatpush.bf16.msra.mxu0 %v952
    %1055 = vmatpush.bf16.msra.mxu0 %v950
    %1056 = vmatpush.bf16.msra.mxu0 %v948
    %1057 = vmatmul.bf16.gmra.mxu0 %v815
    %v1058 = vpop.f32.mrf.mxu0
    %v1059 = vadd.f32 0.0, %v1058
    %v1060 = vpop.f32.mrf.mxu0
    %v1061 = vadd.f32 0.0, %v1060
    %1062 = vmatmul.bf16.gmra.mxu0 %v817
    %v1063 = vpop.f32.mrf.mxu0
    %v1064 = vadd.f32 0.0, %v1063
    %v1065 = vpop.f32.mrf.mxu0
    %v1066 = vadd.f32 0.0, %v1065
    %1067 = vdwg.mxu0
    %1068 = vmatpush.bf16.msra.mxu0 %v978
    %1069 = vmatpush.bf16.msra.mxu0 %v976
    %1070 = vmatpush.bf16.msra.mxu0 %v974
    %1071 = vmatpush.bf16.msra.mxu0 %v972
    %1072 = vmatpush.bf16.msra.mxu0 %v970
    %1073 = vmatpush.bf16.msra.mxu0 %v968
    %1074 = vmatpush.bf16.msra.mxu0 %v966
    %1075 = vmatpush.bf16.msra.mxu0 %v964
    %1076 = vmatmul.bf16.gmra.mxu0 %v816
    %v1077 = vpop.f32.mrf.mxu0
    %v1078 = vadd.f32 %v1059, %v1077
    %v1079 = vpop.f32.mrf.mxu0
    %v1080 = vadd.f32 %v1061, %v1079
    %1081 = vmatmul.bf16.gmra.mxu0 %v818
    %v1082 = vpop.f32.mrf.mxu0
    %v1083 = vadd.f32 %v1064, %v1082
    %v1084 = vpop.f32.mrf.mxu0
    %v1085 = vadd.f32 %v1066, %v1084
    %1086 = vdwg.mxu0
    %v1087 = vpack.c.bf16 %v1078, %v1040
    %v1088 = vpack.c.bf16 %v1080, %v1042
    %v1089 = vpack.c.bf16 %v1083, %v1045
    %v1090 = vpack.c.bf16 %v1085, %v1047
    %v1091 = vld [vmem:[%s8] sm:$0x3]
    %1093 = vst [vmem:[#allocation1] ss:$9 sm:$0xff] %v1091
    %v1094 = vld [vmem:[#allocation1] sm:$0xff]
    %v1095 = vld [vmem:[#allocation1 + $0x9] sm:$0xff]
    %v1096 = vpack.i.b16 %v1094, %v1094
    %v1098 = vperm.slane %v1096, 0
    %v1099 = vpack.i.b16 %v1095, %v1095
    %v1101 = vperm.slane %v1099, 0
    %v1102 = vunpack.c.l.bf16 %v1087
    %v1103 = vunpack.c.h.bf16 %v1087
    %v1104 = vunpack.c.l.bf16 %v1088
    %v1105 = vunpack.c.h.bf16 %v1088
    %v1106 = vunpack.c.l.bf16 %v1089
    %v1107 = vunpack.c.h.bf16 %v1089
    %v1108 = vunpack.c.l.bf16 %v1090
    %v1109 = vunpack.c.h.bf16 %v1090
    %v1110 = vunpack.c.l.bf16 %v1098
    %v1111 = vunpack.c.l.bf16 %v1101
    %v1112 = vadd.f32 %v1102, %v1110
    %v1113 = vadd.f32 %v1103, %v1111
    %v1114 = vadd.f32 %v1104, %v1110
    %v1115 = vadd.f32 %v1105, %v1111
    %v1116 = vadd.f32 %v1106, %v1110
    %v1117 = vadd.f32 %v1107, %v1111
    %v1118 = vadd.f32 %v1108, %v1110
    %v1119 = vadd.f32 %v1109, %v1111
    %v1120 = vpack.c.bf16 %v1113, %v1112
    %v1121 = vpack.c.bf16 %v1115, %v1114
    %v1122 = vpack.c.bf16 %v1117, %v1116
    %v1123 = vpack.c.bf16 %v1119, %v1118
    %v1124 = vunpack.c.l.bf16 %v1120
    %v1125 = vunpack.c.h.bf16 %v1120
    %v1126 = vunpack.c.l.bf16 %v1121
    %v1127 = vunpack.c.h.bf16 %v1121
    %v1128 = vunpack.c.l.bf16 %v1122
    %v1129 = vunpack.c.h.bf16 %v1122
    %v1130 = vunpack.c.l.bf16 %v1123
    %v1131 = vunpack.c.h.bf16 %v1123
    %v1132 = vmax.f32 %v1124, 0.0
    %v1133 = vmax.f32 %v1125, 0.0
    %v1134 = vmax.f32 %v1126, 0.0
    %v1135 = vmax.f32 %v1127, 0.0
    %v1136 = vmax.f32 %v1128, 0.0
    %v1137 = vmax.f32 %v1129, 0.0
    %v1138 = vmax.f32 %v1130, 0.0
    %v1139 = vmax.f32 %v1131, 0.0
    %v1140 = vpack.c.bf16 %v1134, %v1132
    %v1141 = vpack.c.bf16 %v1135, %v1133
    %v1142 = vpack.c.bf16 %v1138, %v1136
    %v1143 = vpack.c.bf16 %v1139, %v1137
    %v1144 = vld [vmem:[%s9] sm:$0xff]
    %v1146 = vunpack.c.l.b16 %v1144
    %v1147 = vunpack.c.h.b16 %v1144
    %v1148 = vpack.c.b16 %v1146, %v1146
    %v1149 = vpack.c.b16 %v1147, %v1147
    %1152 = vmatpush.bf16.xpose.msra.mxu0 0
    %1153 = vmatpush.bf16.xpose.msra.mxu0 0
    %1154 = vmatpush.bf16.xpose.msra.mxu0 0
    %1155 = vmatpush.bf16.xpose.msra.mxu0 0
    %1156 = vmatpush.bf16.xpose.msra.mxu0 0
    %1157 = vmatpush.bf16.xpose.msra.mxu0 0
    %1158 = vmatpush.bf16.xpose.msra.mxu0 %v1142
    %1159 = vmatpush.bf16.xpose.msra.mxu0 %v1140
    %1160 = vmatmul.bf16.gmra.mxu0 %v1148
    %v1161 = vpop.f32.mrf.mxu0
    %v1162 = vadd.f32 0.0, %v1161
    %v1163 = vpop.f32.mrf.mxu0
    %1164 = vdwg.mxu0
    %1165 = vmatpush.bf16.xpose.msra.mxu0 0
    %1166 = vmatpush.bf16.xpose.msra.mxu0 0
    %1167 = vmatpush.bf16.xpose.msra.mxu0 0
    %1168 = vmatpush.bf16.xpose.msra.mxu0 0
    %1169 = vmatpush.bf16.xpose.msra.mxu0 0
    %1170 = vmatpush.bf16.xpose.msra.mxu0 0
    %1171 = vmatpush.bf16.xpose.msra.mxu0 %v1143
    %1172 = vmatpush.bf16.xpose.msra.mxu0 %v1141
    %1173 = vmatmul.bf16.gmra.mxu0 %v1149
    %v1174 = vpop.f32.mrf.mxu0
    %v1175 = vadd.f32 %v1162, %v1174
    %v1176 = vpop.f32.mrf.mxu0
    %1177 = vdwg.mxu0
    %s1178 = sld [smem:[#allocation2]]
    %v1179 = vstv %s1178
    %v1180 = vadd.f32 %v1175, %v1179
    %vm1181 = vcmask 253952
    %1182 = vst.msk [vmem:[#allocation3] sm:$0x1] %vm1181, %v1180
    // Predicated region
    $region46: #{pendulum_net_forward.1} parent=1 // pred_check
      _
    $region47: #{pendulum_net_forward.1} parent=1 // pred_check_branch
      %1184 = sbr.rel (0) target = $region49
    $region48: #{pendulum_net_forward.1} parent=1 // pred_region
      %1186 = vsyncadd [#allocation4], 0
      %s1188 = sshll.u32 [#allocation3], 4
      %s1189 = int_to_ptr.vmem [resolvable:$true] %s1188
      %s1190 = sshll.u32 %s11, 4
      %s1191 = int_to_ptr.hbm [resolvable:$true] %s1190
      %1193 = dma.vmem_to_hbm [thread:$0]  %s1189, 16, %s1191, [#allocation4]
    $region49: #{pendulum_net_forward.1} parent=1 // pred_fallthru
      _
    // Predicated region
    $region50: #{pendulum_net_forward.1} parent=1 // pred_check
      _
    $region51: #{pendulum_net_forward.1} parent=1 // pred_check_branch
      %1195 = sbr.rel (0) target = $region53
    $region52: #{pendulum_net_forward.1} parent=1 // pred_region
      %1197 = dma.done [#allocation4], 16
    $region53: #{pendulum_net_forward.1} parent=1 // pred_fallthru
      _
    %1198 = vsyncpa [#allocation4], 1

</llo_original>
